<compile_context>
chip_gen: v6e
topology: v6e:2x2x1
jax: 0.10.0
libtpu: 0.0.40
codegen_flags: <defaults>
</compile_context>

<pallas_src>
import math

import jax
import jax.numpy as jnp
import numpy as np
from jax import lax
from jax.experimental import pallas as pl
from jax.experimental.pallas import tpu as pltpu

_EPS = 1e-12
_EPS2 = _EPS * _EPS
_LANE = 128

# arccos(x), x in [0, 1]:  sqrt(1 - x) * poly(x)   (Abramowitz & Stegun 4.4.45,
# |error| <= 5e-5 rad ~= 3e-3 deg -- far inside the test tolerance on a
# degrees-scale loss, and ~8 fewer VPU ops/pixel than the 8-term form).
_ACOS_C = (1.5707288, -0.2121144, 0.0742610, -0.0187293)


def _acos_poly(ax):
    """arccos(ax) for ax in [0, 1]."""
    p = _ACOS_C[3]
    for c in _ACOS_C[2::-1]:          # Horner
        p = p * ax + c
    return jnp.sqrt(1.0 - ax) * p


def _cdiv(a, b):
    return -(-a // b)


# ----------------------------- Pallas kernels ------------------------------ #

def _make_rd_kernel(hw, tile, tpp, need_mask):
    """Grid (N, P, tiles_per_P).  Input blocks (1, C, tile), channels on
    sublanes.  Lane/element-shaped f32 VMEM accumulators defer the cross-lane
    reduce + output store to once per (batch, split).  The ragged HW tail is
    masked in-kernel (no jnp.pad pre-pass)."""

    def kernel(x_ref, t_ref, d_ref, z_ref, sam_ref, sq_ref, deg_ref,
               acc_sam, acc_sq, acc_deg):
        j = pl.program_id(2)

        @pl.when(j == 0)
        def _():
            acc_sam[...] = jnp.zeros_like(acc_sam)
            acc_sq[...] = jnp.zeros_like(acc_sq)
            acc_deg[...] = jnp.zeros_like(acc_deg)

        # Upcast in-kernel so bf16 inputs can be streamed straight from HBM.
        x = x_ref[0].astype(jnp.float32)   # (C, tile)  x_hat
        t = t_ref[0].astype(jnp.float32)   # (C, tile)  target
        d = d_ref[0].astype(jnp.float32)   # (C, tile)  deg
        z = z_ref[0].astype(jnp.float32)   # (C, tile)  noise

        if need_mask:
            off = (pl.program_id(1) * tpp + j) * tile
            lane = lax.broadcasted_iota(jnp.int32, (1, tile), 1)
            mask = (off + lane) < hw       # (1, tile); False on the ragged tail
        else:
            mask = None                    # static: every pixel of the tile is valid

        def _masked(v):
            return v if mask is None else jnp.where(mask, v, 0.0)

        # mse partial: (x_hat - target)^2
        diff = x - t
        acc_sq[...] += _masked(diff * diff)

        # deg partial: (deg + target - noise)^2
        dd = d + t - z
        acc_deg[...] += _masked(dd * dd)

        # SAM: per-pixel cosine via EUP rsqrt, in-kernel arccos + NaN->0.
        nom = jnp.sum(x * t, axis=0, keepdims=True)     # (1, tile)
        sx = jnp.sum(x * x, axis=0, keepdims=True)
        st = jnp.sum(t * t, axis=0, keepdims=True)
        ratio = (nom
                 * lax.rsqrt(jnp.maximum(sx, _EPS2))
                 * lax.rsqrt(jnp.maximum(st, _EPS2)))
        ax = jnp.abs(ratio)
        acos_abs = _acos_poly(jnp.minimum(ax, 1.0))
        acos_val = jnp.where(ratio >= 0.0, acos_abs, jnp.pi - acos_abs)
        # Reference zeros only NaNs, i.e. where |ratio| > 1 (fp overshoot).
        valid = ax <= 1.0
        if mask is not None:
            valid = jnp.logical_and(valid, mask)
        acc_sam[...] += jnp.where(valid, acos_val, 0.0)

        @pl.when(j == tpp - 1)
        def _():
            sam_ref[0] = jnp.sum(acc_sam[...], keepdims=True)   # (1, 1)
            sq_ref[0] = jnp.sum(acc_sq[...], keepdims=True)
            deg_ref[0] = jnp.sum(acc_deg[...], keepdims=True)

    return kernel


def _logsum_kernel(*refs):
    """Grid (N,).  Every likelihood arrives as one full (1, C_k, HW_k) block
    (full-extent last dims -> no padding, no (8,128) constraint); all log-sums
    are fused into a single accumulated (1,1,1) output."""
    o_ref = refs[-1]

    @pl.when(pl.program_id(0) == 0)
    def _():
        o_ref[...] = jnp.zeros_like(o_ref)

    total = None
    for r in refs[:-1]:
        s = jnp.sum(jnp.log(r[0].astype(jnp.float32)), keepdims=True)   # (1, 1)
        total = s if total is None else total + s
    o_ref[0] += total


# ------------------------------- planning ---------------------------------- #

def _plan(hw, c, itemsize, n):
    """Pick the pixel-tile size and an optional 2-way split of the tile axis.

    * per-input VMEM buffer targeted at ~1 MiB (C pads to 8 sublanes); 4 inputs
      x 2 pipeline buffers + 3 f32 accumulators stay well under 32 MiB, so the
      plan is portable to v7x (64 MiB physical VMEM).
    * when N is odd (esp. N == 1) and the tile count is even, the tile axis is
      split into 2 'parallel' chunks so both v7x TensorCores get work.
    """
    c_pad = _cdiv(c, 8) * 8
    budget = 1 << 20                                   # ~1 MiB per input buffer
    tile = (budget // (c_pad * itemsize)) // _LANE * _LANE
    tile = max(_LANE, min(tile, 1 << 16))
    if hw <= tile:                                     # whole image fits one tile
        return hw, 1, 1, 1                             # (tile, n_tiles, P, tpp)
    n_tiles = _cdiv(hw, tile)
    if n % 2 == 1 and n_tiles >= 2 and n_tiles % 2 == 1:
        # Nudge the tile down so the tile count is even and splits cleanly in 2
        # (avoids fully out-of-bounds blocks -> no index clamping needed).
        t2 = _cdiv(_cdiv(hw, n_tiles + 1), _LANE) * _LANE
        if t2 >= _LANE and _cdiv(hw, t2) % 2 == 0:
            tile, n_tiles = t2, _cdiv(hw, t2)
    p_split = 2 if (n % 2 == 1 and n_tiles >= 2 and n_tiles % 2 == 0) else 1
    return tile, n_tiles, p_split, n_tiles // p_split


# ------------------------------- wrappers ----------------------------------- #

def _bpp_loss(likelihoods, n, num_pixels):
    liks = list(likelihoods.values())
    if not liks:
        return jnp.float32(0.0)
    l3 = []
    for l in liks:
        if l.ndim >= 3:
            l3.append(l.reshape(l.shape[0], l.shape[1], -1))
        else:
            l3.append(l.reshape(l.shape[0], 1, -1))
    in_specs = [pl.BlockSpec((1,) + a.shape[1:], lambda i: (i, 0, 0)) for a in l3]
    total = pl.pallas_call(
        _logsum_kernel,
        grid=(n,),
        in_specs=in_specs,
        out_specs=pl.BlockSpec((1, 1, 1), lambda i: (0, 0, 0)),
        out_shape=jax.ShapeDtypeStruct((1, 1, 1), jnp.float32),
        compiler_params=pltpu.CompilerParams(
            dimension_semantics=("arbitrary",)),
    )(*l3)
    return total[0, 0, 0] / (-math.log(2) * num_pixels)


def rate_distortion_sam_deg_loss(output, target, noise,
                                 lmbda=0.01, alpha=0.01, beta=0.01):
    N, C, H, W = target.shape
    HW = H * W
    num_pixels = N * H * W

    x4, d4 = output['x_hat'], output['deg']
    itemsize = max(a.dtype.itemsize for a in (x4, target, d4, noise))
    tile, n_tiles, p_split, tpp = _plan(HW, C, itemsize, N)

    # Free (row-major) reshapes -- no jnp.pad pre-pass; ragged tail is masked
    # inside the kernel instead.
    x3 = x4.reshape(N, C, HW)
    t3 = target.reshape(N, C, HW)
    d3 = d4.reshape(N, C, HW)
    z3 = noise.reshape(N, C, HW)

    in_spec = pl.BlockSpec((1, C, tile), lambda i, p, j: (i, 0, p * tpp + j))
    out_spec = pl.BlockSpec((1, 1, 1), lambda i, p, j: (i * p_split + p, 0, 0))
    out_shape = jax.ShapeDtypeStruct((N * p_split, 1, 1), jnp.float32)

    kernel = _make_rd_kernel(HW, tile, tpp, tile * n_tiles != HW)

    sam_part, sq_part, deg_part = pl.pallas_call(
        kernel,
        grid=(N, p_split, tpp),
        in_specs=[in_spec] * 4,
        out_specs=(out_spec, out_spec, out_spec),
        out_shape=(out_shape, out_shape, out_shape),
        scratch_shapes=[pltpu.VMEM((1, tile), jnp.float32),   # SAM angles
                        pltpu.VMEM((C, tile), jnp.float32),   # (x_hat - target)^2
                        pltpu.VMEM((C, tile), jnp.float32)],  # (deg + target - noise)^2
        compiler_params=pltpu.CompilerParams(
            dimension_semantics=("parallel", "parallel", "arbitrary"),
            vmem_limit_bytes=48 * 1024 * 1024),
    )(x3, t3, d3, z3)

    sam_loss = jnp.sum(sam_part) / (N * HW) / jnp.pi * 180.0
    mse_loss = jnp.sum(sq_part) / (N * C * H * W)
    deg_loss = jnp.sum(deg_part) / (N * C * H * W)
    bpp_loss = _bpp_loss(output['likelihoods'], N, num_pixels)

    loss = (lmbda * 255.0 ** 2 * mse_loss + bpp_loss
            + beta * sam_loss + alpha * 255.0 ** 2 * deg_loss)
    return {'sam_loss': sam_loss, 'deg_loss': deg_loss, 'bpp_loss': bpp_loss,
            'mse_loss': mse_loss, 'loss': loss}


# --------------------------- pure-JAX reference ----------------------------- #

def _reference(output, target, noise, lmbda=0.01, alpha=0.01, beta=0.01):
    N, C, H, W = target.shape
    num_pixels = N * H * W
    xh = output['x_hat']
    sam_total = 0.0
    for i in range(N):
        xt, tg = xh[i], target[i]
        nom = jnp.sum(xt * tg, axis=0)
        den = (jnp.maximum(jnp.sqrt(jnp.sum(xt * xt, axis=0)), _EPS)
               * jnp.maximum(jnp.sqrt(jnp.sum(tg * tg, axis=0)), _EPS))
        sam = jnp.arccos(nom / den)
        sam = jnp.where(jnp.isnan(sam), 0.0, sam)
        sam_total += jnp.sum(sam) / (H * W) / np.pi * 180.0
    sam_loss = sam_total / N
    deg_loss = jnp.mean((output['deg'] + target - noise) ** 2)
    mse_loss = jnp.mean((xh - target) ** 2)
    bpp = sum(jnp.sum(jnp.log(l)) / (-math.log(2) * num_pixels)
              for l in output['likelihoods'].values())
    loss = (lmbda * 255.0 ** 2 * mse_loss + bpp
            + beta * sam_loss + alpha * 255.0 ** 2 * deg_loss)
    return {'sam_loss': sam_loss, 'deg_loss': deg_loss, 'bpp_loss': bpp,
            'mse_loss': mse_loss, 'loss': loss}


# ---------------------------------- main ------------------------------------ #

if __name__ == "__main__":
    def _run_case(key, N, C, H, W, lik_shapes):
        ks = jax.random.split(key, 4 + len(lik_shapes))
        target = jax.random.uniform(ks[0], (N, C, H, W), jnp.float32)
        x_hat = jax.random.uniform(ks[1], (N, C, H, W), jnp.float32)
        deg = 0.1 * jax.random.normal(ks[2], (N, C, H, W), jnp.float32)
        noise = jax.random.normal(ks[3], (N, C, H, W), jnp.float32)
        liks = {name: jax.random.uniform(k, shape, jnp.float32,
                                         minval=0.01, maxval=1.0)
                for (name, shape), k in zip(lik_shapes.items(), ks[4:])}
        output = {'x_hat': x_hat, 'deg': deg, 'likelihoods': liks}

        out = rate_distortion_sam_deg_loss(output, target, noise)
        out = jax.tree_util.tree_map(jax.block_until_ready, out)

        ref = _reference(output, target, noise)
        for name in ref:
            np.testing.assert_allclose(np.asarray(out[name]),
                                       np.asarray(ref[name]),
                                       rtol=2e-3, atol=2e-5)

    key = jax.random.PRNGKey(0)
    k1, k2 = jax.random.split(key)

    # Small canonical shape (single tile, no masking path).
    _run_case(k1, 2, 4, 16, 16, {'y': (2, 8, 4, 4), 'z': (2, 8, 2, 2)})
    # N == 1 with a non-tile-aligned H*W: exercises in-kernel tail masking,
    # multi-tile accumulation, and the 2-way parallel split of the tile axis.
    _run_case(k2, 1, 3, 280, 240, {'y': (1, 6, 35, 30), 'z': (1, 6, 9, 8)})

    print("KERNEL_OK")
</pallas_src>

<mosaic_0001>
module attributes {stable_mosaic.version = 11 : i64} {
  func.func @kernel(%arg0: i32, %arg1: i32, %arg2: i32, %arg3: memref<1x4x256xf32, #tpu.memory_space<vmem>>, %arg4: memref<1x4x256xf32, #tpu.memory_space<vmem>>, %arg5: memref<1x4x256xf32, #tpu.memory_space<vmem>>, %arg6: memref<1x4x256xf32, #tpu.memory_space<vmem>>, %arg7: memref<1x1x1xf32, #tpu.memory_space<vmem>>, %arg8: memref<1x1x1xf32, #tpu.memory_space<vmem>>, %arg9: memref<1x1x1xf32, #tpu.memory_space<vmem>>, %arg10: memref<1x256xf32, #tpu.memory_space<vmem>>, %arg11: memref<4x256xf32, #tpu.memory_space<vmem>>, %arg12: memref<4x256xf32, #tpu.memory_space<vmem>>) attributes {dimension_semantics = [#tpu.dimension_semantics<parallel>, #tpu.dimension_semantics<parallel>, #tpu.dimension_semantics<arbitrary>], iteration_bounds = array<i64: 2, 1, 1>, scalar_prefetch = 0 : i64, scratch_operands = 3 : i64, tpu.core_type = #tpu.core_type<tc>, window_params = [{transform_indices = @transform_0, window_bounds = array<i64: 1, 4, 256>}, {transform_indices = @transform_1, window_bounds = array<i64: 1, 4, 256>}, {transform_indices = @transform_2, window_bounds = array<i64: 1, 4, 256>}, {transform_indices = @transform_3, window_bounds = array<i64: 1, 4, 256>}, {transform_indices = @transform_4, window_bounds = array<i64: 1, 1, 1>}, {transform_indices = @transform_5, window_bounds = array<i64: 1, 1, 1>}, {transform_indices = @transform_6, window_bounds = array<i64: 1, 1, 1>}]} {
    %c0_i32 = arith.constant 0 : i32
    %0 = arith.cmpi eq, %arg2, %c0_i32 : i32
    %1 = arith.extui %0 : i1 to i32
    %c0_i32_0 = arith.constant 0 : i32
    %2 = arith.cmpi ne, %1, %c0_i32_0 : i32
    scf.if %2 {
      %cst_40 = arith.constant 0.000000e+00 : f32
      %71 = vector.broadcast %cst_40 : f32 to vector<1x256xf32>
      %c0_41 = arith.constant 0 : index
      %c0_42 = arith.constant 0 : index
      %72 = vector.load %arg10[%c0_41, %c0_42] : memref<1x256xf32, #tpu.memory_space<vmem>>, vector<1x256xf32>
      tpu.vector_store %arg10[%c0_41, %c0_42], %71 {strides = array<i32>} : memref<1x256xf32, #tpu.memory_space<vmem>>, vector<1x256xf32>,
      %cst_43 = arith.constant 0.000000e+00 : f32
      %73 = vector.broadcast %cst_43 : f32 to vector<4x256xf32>
      %c0_44 = arith.constant 0 : index
      %c0_45 = arith.constant 0 : index
      %74 = vector.load %arg11[%c0_44, %c0_45] : memref<4x256xf32, #tpu.memory_space<vmem>>, vector<4x256xf32>
      tpu.vector_store %arg11[%c0_44, %c0_45], %73 {strides = array<i32>} : memref<4x256xf32, #tpu.memory_space<vmem>>, vector<4x256xf32>,
      %cst_46 = arith.constant 0.000000e+00 : f32
      %75 = vector.broadcast %cst_46 : f32 to vector<4x256xf32>
      %c0_47 = arith.constant 0 : index
      %c0_48 = arith.constant 0 : index
      %76 = vector.load %arg12[%c0_47, %c0_48] : memref<4x256xf32, #tpu.memory_space<vmem>>, vector<4x256xf32>
      tpu.vector_store %arg12[%c0_47, %c0_48], %75 {strides = array<i32>} : memref<4x256xf32, #tpu.memory_space<vmem>>, vector<4x256xf32>,
    } else {
    }
    %c0 = arith.constant 0 : index
    %c0_1 = arith.constant 0 : index
    %c0_2 = arith.constant 0 : index
    %3 = vector.load %arg3[%c0, %c0_1, %c0_2] : memref<1x4x256xf32, #tpu.memory_space<vmem>>, vector<1x4x256xf32>
    %4 = vector.shape_cast %3 : vector<1x4x256xf32> to vector<4x256xf32>
    %c0_3 = arith.constant 0 : index
    %c0_4 = arith.constant 0 : index
    %c0_5 = arith.constant 0 : index
    %5 = vector.load %arg4[%c0_3, %c0_4, %c0_5] : memref<1x4x256xf32, #tpu.memory_space<vmem>>, vector<1x4x256xf32>
    %6 = vector.shape_cast %5 : vector<1x4x256xf32> to vector<4x256xf32>
    %c0_6 = arith.constant 0 : index
    %c0_7 = arith.constant 0 : index
    %c0_8 = arith.constant 0 : index
    %7 = vector.load %arg5[%c0_6, %c0_7, %c0_8] : memref<1x4x256xf32, #tpu.memory_space<vmem>>, vector<1x4x256xf32>
    %8 = vector.shape_cast %7 : vector<1x4x256xf32> to vector<4x256xf32>
    %c0_9 = arith.constant 0 : index
    %c0_10 = arith.constant 0 : index
    %c0_11 = arith.constant 0 : index
    %9 = vector.load %arg6[%c0_9, %c0_10, %c0_11] : memref<1x4x256xf32, #tpu.memory_space<vmem>>, vector<1x4x256xf32>
    %10 = vector.shape_cast %9 : vector<1x4x256xf32> to vector<4x256xf32>
    %11 = arith.subf %4, %6 : vector<4x256xf32>
    %c0_12 = arith.constant 0 : index
    %c0_13 = arith.constant 0 : index
    %12 = vector.load %arg11[%c0_12, %c0_13] : memref<4x256xf32, #tpu.memory_space<vmem>>, vector<4x256xf32>
    %13 = arith.mulf %11, %11 : vector<4x256xf32>
    %14 = arith.addf %12, %13 : vector<4x256xf32>
    %c0_14 = arith.constant 0 : index
    %c0_15 = arith.constant 0 : index
    %15 = vector.load %arg11[%c0_14, %c0_15] : memref<4x256xf32, #tpu.memory_space<vmem>>, vector<4x256xf32>
    tpu.vector_store %arg11[%c0_14, %c0_15], %14 {strides = array<i32>} : memref<4x256xf32, #tpu.memory_space<vmem>>, vector<4x256xf32>,
    %16 = arith.addf %8, %6 : vector<4x256xf32>
    %17 = arith.subf %16, %10 : vector<4x256xf32>
    %c0_16 = arith.constant 0 : index
    %c0_17 = arith.constant 0 : index
    %18 = vector.load %arg12[%c0_16, %c0_17] : memref<4x256xf32, #tpu.memory_space<vmem>>, vector<4x256xf32>
    %19 = arith.mulf %17, %17 : vector<4x256xf32>
    %20 = arith.addf %18, %19 : vector<4x256xf32>
    %c0_18 = arith.constant 0 : index
    %c0_19 = arith.constant 0 : index
    %21 = vector.load %arg12[%c0_18, %c0_19] : memref<4x256xf32, #tpu.memory_space<vmem>>, vector<4x256xf32>
    tpu.vector_store %arg12[%c0_18, %c0_19], %20 {strides = array<i32>} : memref<4x256xf32, #tpu.memory_space<vmem>>, vector<4x256xf32>,
    %22 = arith.mulf %4, %6 : vector<4x256xf32>
    %cst = arith.constant dense<0.000000e+00> : vector<256xf32>
    %23 = vector.multi_reduction <add>, %22, %cst [0] : vector<4x256xf32> to vector<256xf32>
    %24 = vector.shape_cast %23 : vector<256xf32> to vector<1x256xf32>
    %25 = arith.mulf %4, %4 : vector<4x256xf32>
    %cst_20 = arith.constant dense<0.000000e+00> : vector<256xf32>
    %26 = vector.multi_reduction <add>, %25, %cst_20 [0] : vector<4x256xf32> to vector<256xf32>
    %27 = vector.shape_cast %26 : vector<256xf32> to vector<1x256xf32>
    %28 = arith.mulf %6, %6 : vector<4x256xf32>
    %cst_21 = arith.constant dense<0.000000e+00> : vector<256xf32>
    %29 = vector.multi_reduction <add>, %28, %cst_21 [0] : vector<4x256xf32> to vector<256xf32>
    %30 = vector.shape_cast %29 : vector<256xf32> to vector<1x256xf32>
    %cst_22 = arith.constant 1.000000e-24 : f32
    %31 = vector.broadcast %cst_22 : f32 to vector<1x256xf32>
    %32 = arith.maximumf %27, %31 : vector<1x256xf32>
    %33 = math.rsqrt %32 : vector<1x256xf32>
    %34 = arith.mulf %24, %33 : vector<1x256xf32>
    %cst_23 = arith.constant 1.000000e-24 : f32
    %35 = vector.broadcast %cst_23 : f32 to vector<1x256xf32>
    %36 = arith.maximumf %30, %35 : vector<1x256xf32>
    %37 = math.rsqrt %36 : vector<1x256xf32>
    %38 = arith.mulf %34, %37 : vector<1x256xf32>
    %39 = math.absf %38 : vector<1x256xf32>
    %cst_24 = arith.constant 1.000000e+00 : f32
    %40 = vector.broadcast %cst_24 : f32 to vector<1x256xf32>
    %41 = arith.minimumf %39, %40 : vector<1x256xf32>
    %cst_25 = arith.constant -1.872930e-02 : f32
    %42 = vector.broadcast %cst_25 : f32 to vector<1x256xf32>
    %43 = arith.mulf %42, %41 : vector<1x256xf32>
    %cst_26 = arith.constant 7.426100e-02 : f32
    %44 = vector.broadcast %cst_26 : f32 to vector<1x256xf32>
    %45 = arith.addf %43, %44 : vector<1x256xf32>
    %46 = arith.mulf %45, %41 : vector<1x256xf32>
    %cst_27 = arith.constant -0.212114394 : f32
    %47 = vector.broadcast %cst_27 : f32 to vector<1x256xf32>
    %48 = arith.addf %46, %47 : vector<1x256xf32>
    %49 = arith.mulf %48, %41 : vector<1x256xf32>
    %cst_28 = arith.constant 1.57072878 : f32
    %50 = vector.broadcast %cst_28 : f32 to vector<1x256xf32>
    %51 = arith.addf %49, %50 : vector<1x256xf32>
    %cst_29 = arith.constant 1.000000e+00 : f32
    %52 = vector.broadcast %cst_29 : f32 to vector<1x256xf32>
    %53 = arith.subf %52, %41 : vector<1x256xf32>
    %54 = math.sqrt %53 : vector<1x256xf32>
    %55 = arith.mulf %54, %51 : vector<1x256xf32>
    %cst_30 = arith.constant 0.000000e+00 : f32
    %56 = vector.broadcast %cst_30 : f32 to vector<1x256xf32>
    %57 = arith.cmpf oge, %38, %56 : vector<1x256xf32>
    %cst_31 = arith.constant 3.14159274 : f32
    %58 = vector.broadcast %cst_31 : f32 to vector<1x256xf32>
    %59 = arith.subf %58, %55 : vector<1x256xf32>
    %60 = arith.select %57, %55, %59 : vector<1x256xi1>, vector<1x256xf32>
    %cst_32 = arith.constant 1.000000e+00 : f32
    %61 = vector.broadcast %cst_32 : f32 to vector<1x256xf32>
    %62 = arith.cmpf ole, %39, %61 : vector<1x256xf32>
    %c0_33 = arith.constant 0 : index
    %c0_34 = arith.constant 0 : index
    %63 = vector.load %arg10[%c0_33, %c0_34] : memref<1x256xf32, #tpu.memory_space<vmem>>, vector<1x256xf32>
    %cst_35 = arith.constant 0.000000e+00 : f32
    %64 = vector.broadcast %cst_35 : f32 to vector<1x256xf32>
    %65 = arith.select %62, %60, %64 : vector<1x256xi1>, vector<1x256xf32>
    %66 = arith.addf %63, %65 : vector<1x256xf32>
    %c0_36 = arith.constant 0 : index
    %c0_37 = arith.constant 0 : index
    %67 = vector.load %arg10[%c0_36, %c0_37] : memref<1x256xf32, #tpu.memory_space<vmem>>, vector<1x256xf32>
    tpu.vector_store %arg10[%c0_36, %c0_37], %66 {strides = array<i32>} : memref<1x256xf32, #tpu.memory_space<vmem>>, vector<1x256xf32>,
    %c0_i32_38 = arith.constant 0 : i32
    %68 = arith.cmpi eq, %arg2, %c0_i32_38 : i32
    %69 = arith.extui %68 : i1 to i32
    %c0_i32_39 = arith.constant 0 : i32
    %70 = arith.cmpi ne, %69, %c0_i32_39 : i32
    scf.if %70 {
      %c0_40 = arith.constant 0 : index
      %c0_41 = arith.constant 0 : index
      %71 = vector.load %arg10[%c0_40, %c0_41] : memref<1x256xf32, #tpu.memory_space<vmem>>, vector<1x256xf32>
      %72 = vector.shape_cast %71 : vector<1x256xf32> to vector<1x1x256xf32>
      %cst_42 = arith.constant dense<0.000000e+00> : vector<1xf32>
      %73 = vector.multi_reduction <add>, %72, %cst_42 [1, 2] : vector<1x1x256xf32> to vector<1xf32>
      %74 = vector.shape_cast %73 : vector<1xf32> to vector<1x1x1xf32>
      %75 = vector.extract %74[0, 0, 0] : f32 from vector<1x1x1xf32>
      %76 = vector.broadcast %75 : f32 to vector<1x1xf32>
      %c0_43 = arith.constant 0 : index
      %c0_44 = arith.constant 0 : index
      %c0_45 = arith.constant 0 : index
      %77 = vector.load %arg7[%c0_43, %c0_44, %c0_45] : memref<1x1x1xf32, #tpu.memory_space<vmem>>, vector<1x1x1xf32>
      %78 = vector.shape_cast %77 : vector<1x1x1xf32> to vector<1x1xf32>
      %79 = vector.shape_cast %76 : vector<1x1xf32> to vector<1x1x1xf32>
      tpu.vector_store %arg7[%c0_43, %c0_44, %c0_45], %79 {strides = array<i32>} : memref<1x1x1xf32, #tpu.memory_space<vmem>>, vector<1x1x1xf32>,
      %c0_46 = arith.constant 0 : index
      %c0_47 = arith.constant 0 : index
      %80 = vector.load %arg11[%c0_46, %c0_47] : memref<4x256xf32, #tpu.memory_space<vmem>>, vector<4x256xf32>
      %81 = vector.shape_cast %80 : vector<4x256xf32> to vector<1x4x256xf32>
      %cst_48 = arith.constant dense<0.000000e+00> : vector<1xf32>
      %82 = vector.multi_reduction <add>, %81, %cst_48 [1, 2] : vector<1x4x256xf32> to vector<1xf32>
      %83 = vector.shape_cast %82 : vector<1xf32> to vector<1x1x1xf32>
      %84 = vector.extract %83[0, 0, 0] : f32 from vector<1x1x1xf32>
      %85 = vector.broadcast %84 : f32 to vector<1x1xf32>
      %c0_49 = arith.constant 0 : index
      %c0_50 = arith.constant 0 : index
      %c0_51 = arith.constant 0 : index
      %86 = vector.load %arg8[%c0_49, %c0_50, %c0_51] : memref<1x1x1xf32, #tpu.memory_space<vmem>>, vector<1x1x1xf32>
      %87 = vector.shape_cast %86 : vector<1x1x1xf32> to vector<1x1xf32>
      %88 = vector.shape_cast %85 : vector<1x1xf32> to vector<1x1x1xf32>
      tpu.vector_store %arg8[%c0_49, %c0_50, %c0_51], %88 {strides = array<i32>} : memref<1x1x1xf32, #tpu.memory_space<vmem>>, vector<1x1x1xf32>,
      %c0_52 = arith.constant 0 : index
      %c0_53 = arith.constant 0 : index
      %89 = vector.load %arg12[%c0_52, %c0_53] : memref<4x256xf32, #tpu.memory_space<vmem>>, vector<4x256xf32>
      %90 = vector.shape_cast %89 : vector<4x256xf32> to vector<1x4x256xf32>
      %cst_54 = arith.constant dense<0.000000e+00> : vector<1xf32>
      %91 = vector.multi_reduction <add>, %90, %cst_54 [1, 2] : vector<1x4x256xf32> to vector<1xf32>
      %92 = vector.shape_cast %91 : vector<1xf32> to vector<1x1x1xf32>
      %93 = vector.extract %92[0, 0, 0] : f32 from vector<1x1x1xf32>
      %94 = vector.broadcast %93 : f32 to vector<1x1xf32>
      %c0_55 = arith.constant 0 : index
      %c0_56 = arith.constant 0 : index
      %c0_57 = arith.constant 0 : index
      %95 = vector.load %arg9[%c0_55, %c0_56, %c0_57] : memref<1x1x1xf32, #tpu.memory_space<vmem>>, vector<1x1x1xf32>
      %96 = vector.shape_cast %95 : vector<1x1x1xf32> to vector<1x1xf32>
      %97 = vector.shape_cast %94 : vector<1x1xf32> to vector<1x1x1xf32>
      tpu.vector_store %arg9[%c0_55, %c0_56, %c0_57], %97 {strides = array<i32>} : memref<1x1x1xf32, #tpu.memory_space<vmem>>, vector<1x1x1xf32>,
    } else {
    }
    return
  }
  func.func @transform_0(%arg0: i32, %arg1: i32, %arg2: i32) -> (i32, i32, i32) {
    %c1_i32 = arith.constant 1 : i32
    %0 = arith.muli %arg1, %c1_i32 : i32
    %1 = arith.addi %0, %arg2 : i32
    %c0_i32 = arith.constant 0 : i32
    %c0_i32_0 = arith.constant 0 : i32
    return %arg0, %c0_i32, %1 : i32, i32, i32
  }
  func.func @transform_1(%arg0: i32, %arg1: i32, %arg2: i32) -> (i32, i32, i32) {
    %c1_i32 = arith.constant 1 : i32
    %0 = arith.muli %arg1, %c1_i32 : i32
    %1 = arith.addi %0, %arg2 : i32
    %c0_i32 = arith.constant 0 : i32
    %c0_i32_0 = arith.constant 0 : i32
    return %arg0, %c0_i32, %1 : i32, i32, i32
  }
  func.func @transform_2(%arg0: i32, %arg1: i32, %arg2: i32) -> (i32, i32, i32) {
    %c1_i32 = arith.constant 1 : i32
    %0 = arith.muli %arg1, %c1_i32 : i32
    %1 = arith.addi %0, %arg2 : i32
    %c0_i32 = arith.constant 0 : i32
    %c0_i32_0 = arith.constant 0 : i32
    return %arg0, %c0_i32, %1 : i32, i32, i32
  }
  func.func @transform_3(%arg0: i32, %arg1: i32, %arg2: i32) -> (i32, i32, i32) {
    %c1_i32 = arith.constant 1 : i32
    %0 = arith.muli %arg1, %c1_i32 : i32
    %1 = arith.addi %0, %arg2 : i32
    %c0_i32 = arith.constant 0 : i32
    %c0_i32_0 = arith.constant 0 : i32
    return %arg0, %c0_i32, %1 : i32, i32, i32
  }
  func.func @transform_4(%arg0: i32, %arg1: i32, %arg2: i32) -> (i32, i32, i32) {
    %c1_i32 = arith.constant 1 : i32
    %0 = arith.muli %arg0, %c1_i32 : i32
    %1 = arith.addi %0, %arg1 : i32
    %c0_i32 = arith.constant 0 : i32
    %c0_i32_0 = arith.constant 0 : i32
    %c0_i32_1 = arith.constant 0 : i32
    return %1, %c0_i32, %c0_i32_0 : i32, i32, i32
  }
  func.func @transform_5(%arg0: i32, %arg1: i32, %arg2: i32) -> (i32, i32, i32) {
    %c1_i32 = arith.constant 1 : i32
    %0 = arith.muli %arg0, %c1_i32 : i32
    %1 = arith.addi %0, %arg1 : i32
    %c0_i32 = arith.constant 0 : i32
    %c0_i32_0 = arith.constant 0 : i32
    %c0_i32_1 = arith.constant 0 : i32
    return %1, %c0_i32, %c0_i32_0 : i32, i32, i32
  }
  func.func @transform_6(%arg0: i32, %arg1: i32, %arg2: i32) -> (i32, i32, i32) {
    %c1_i32 = arith.constant 1 : i32
    %0 = arith.muli %arg0, %c1_i32 : i32
    %1 = arith.addi %0, %arg1 : i32
    %c0_i32 = arith.constant 0 : i32
    %c0_i32_0 = arith.constant 0 : i32
    %c0_i32_1 = arith.constant 0 : i32
    return %1, %c0_i32, %c0_i32_0 : i32, i32, i32
  }
}

</mosaic_0001>

<llo_original>
// kernel: tpu_custom_call.1
$region0: #{tpu_custom_call.1}
  #allocation0 [shape = 'u32[]', space=smem, size = 0x4, offset = 0x4, fixed_abs, tag = 'smem constant byte address 0x4 - core index']
  #allocation1 [shape = 'u32[144,128]{1,0:T(1,128)}', space=vmem, size = 0x12000, scoped, tag = 'internal scratch']
  #allocation2 [shape = 'f32[1,256]{1,0:T(1,128)}', space=vmem, size = 0x400, scoped, tag = 'scratch operand']
  #allocation3 [shape = 'f32[4,256]{1,0:T(4,128)}', space=vmem, size = 0x1000, scoped, tag = 'scratch operand']
  #allocation4 [shape = 'f32[4,256]{1,0:T(4,128)}', space=vmem, size = 0x1000, scoped, tag = 'scratch operand']
  %s0 = inlined_call_operand.hbm [shape: f32[2,4,256], index: 0, kind: input, shape index: {}]
  %s1 = inlined_call_operand.hbm [shape: f32[2,4,256], index: 1, kind: input, shape index: {}]
  %s2 = inlined_call_operand.hbm [shape: f32[2,4,256], index: 2, kind: input, shape index: {}]
  %s3 = inlined_call_operand.hbm [shape: f32[2,4,256], index: 3, kind: input, shape index: {}]
  %s4 = inlined_call_operand.vmem [shape: f32[2,1,1], index: 4, kind: output, shape index: {0}]
  %s5 = inlined_call_operand.vmem [shape: f32[2,1,1], index: 5, kind: output, shape index: {1}]
  %s6 = inlined_call_operand.vmem [shape: f32[2,1,1], index: 6, kind: output, shape index: {2}]
  %7 = xla_tuple %s4, %s5, %s6
  %s8 = sld [smem:[#allocation0]]
  $region89: #{tpu_custom_call.1} parent=0
    _
  %s10 = ssub.s32 1, %s8
  %s11 = scalar_select 0, %s10, %s8
  $region1: #{tpu_custom_call.1} parent=0
    #allocation5 [shape = 'u8[8192]{0}', space=vmem, size = 0x2000, scoped, tag = 'input window, operand 0']
    #allocation6 [shape = 's32[2]{0}', space=sflag, size = 0x8, scoped, tag = 'scoped memory for tpu_custom_call.1']
    #allocation7 [shape = 'u8[8192]{0}', space=vmem, size = 0x2000, scoped, tag = 'input window, operand 1']
    #allocation8 [shape = 's32[2]{0}', space=sflag, size = 0x8, scoped, tag = 'scoped memory for tpu_custom_call.1']
    #allocation9 [shape = 'u8[8192]{0}', space=vmem, size = 0x2000, scoped, tag = 'input window, operand 2']
    #allocation10 [shape = 'u8[8192]{0}', space=vmem, size = 0x2000, scoped, tag = 'input window, operand 3']
    #allocation11 [shape = 's32[2]{0}', space=sflag, size = 0x8, scoped, tag = 'scoped memory for tpu_custom_call.1']
    %12 = vsyncpa [#allocation6], 0
    %s13 = scalar_lea.sflag [#allocation6], 1
    %14 = vsyncpa %s13, 0
    %15 = vsyncpa [#allocation8], 0
    %s16 = scalar_lea.sflag [#allocation8], 1
    %17 = vsyncpa %s16, 0
    %18 = vsyncpa [#allocation11], 0
    %s19 = scalar_lea.sflag [#allocation11], 1
    %20 = vsyncpa %s19, 0
    loop: start=0, step=1, limit=4
    $region2: #{tpu_custom_call.1} parent=1 // loop_pre_header
      _
    $region3: #{tpu_custom_call.1} parent=1 // loop_header
      %s22 = sphi 0, %s26
      %p23 = scmp.ge.s32.totalorder %s22, 4
      %s29 = sphi 0, %s48
      %s30 = sphi 0, %s44
      %s31 = sphi 0, %s40
      %s32 = sphi 0, %s29
      %s33 = sphi 0, %s30
      %s34 = sphi 0, %s31
      %s35 = sphi 0, %s32
      %s36 = sphi 0, %s33
      %s37 = sphi 0, %s34
      %s55 = sphi 0, %s57
      %s58 = sphi 0, %s55
      %s59 = sphi 0, %s58
      %s75 = sphi 0, %s59
      %s85 = sphi 0, %s87
      %s88 = sphi 0, %s85
      %s89 = sphi 0, %s88
      %s105 = sphi 0, %s89
      %s115 = sphi 0, %s117
      %s118 = sphi 0, %s115
      %s119 = sphi 0, %s118
      %s135 = sphi 0, %s119
      %s145 = sphi 0, %s147
      %s148 = sphi 0, %s145
      %s149 = sphi 0, %s148
      %s165 = sphi 0, %s149
      %s173 = sphi 0, %s175
      %s176 = sphi 0, %s173
      %s177 = sphi 0, %s176
      %s193 = sphi 0, %s177
      %s201 = sphi 0, %s203
      %s204 = sphi 0, %s201
      %s205 = sphi 0, %s204
      %s221 = sphi 0, %s205
      %s229 = sphi 0, %s231
      %s232 = sphi 0, %s229
      %s233 = sphi 0, %s232
      %s249 = sphi 0, %s233
    $region4: #{tpu_custom_call.1} parent=1 // loop_header_branch
      %25 = sbr.rel (%p23) target = $region8
    $region5: #{tpu_custom_call.1} parent=1 // loop_body
      %s27 = ssub.s32 %s22, 1
      %s28 = ssub.s32 %s22, 2
      %s38 = sadd.s32 1, %s31
      %p39 = scmp.ge.s32.totalorder %s38, 1
      %s40 = scalar_select %p39, 0, %s38
      %s41 = sadd.s32 1, %s30
      %s42 = scalar_select %p39, %s41, %s30
      %p43 = scmp.ge.s32.totalorder %s42, 1
      %s44 = scalar_select %p43, 0, %s42
      %s45 = sadd.s32 1, %s29
      %s46 = scalar_select %p43, %s45, %s29
      %p47 = scmp.ge.s32.totalorder %s46, 2
      %s48 = scalar_select %p47, 0, %s46
      %s49 = sadd.s32 %s30, %s31
      %s50 = sadd.s32 %s44, %s40
      %s51 = ssub.s32 %s29, %s48
      %s52 = ssub.s32 %s49, %s50
      %s53 = sor.u32 %s51, %s52
      %p54 = scmp.eq.s32.totalorder %s53, 0
      %s56 = sadd.s32 %s55, 1
      %s57 = scalar_select %p54, %s55, %s56
      %p60 = pneg %p54
      %p61 = scmp.eq.s32.totalorder %s22, 1
      %p62 = por %p60, %p61
      %p63 = scmp.ne.s32.totalorder %s55, %s58
      %p64 = scmp.eq.s32.totalorder %s22, 0
      %p65 = por %p63, %p64
      %p66 = scmp.ne.s32.totalorder %s55, %s58
      %p67 = scmp.eq.s32.totalorder %s27, 1
      %p68 = por %p66, %p67
      %p69 = scmp.ne.s32.totalorder %s58, %s59
      %p70 = scmp.eq.s32.totalorder %s27, 0
      %p71 = por %p69, %p70
      %p72 = scmp.ne.s32.totalorder %s58, %s59
      %p73 = scmp.eq.s32.totalorder %s28, 1
      %p74 = por %p72, %p73
      %p76 = scmp.ne.s32.totalorder %s59, %s75
      %p77 = scmp.eq.s32.totalorder %s28, 0
      %p78 = por %p76, %p77
      %s79 = sadd.s32 %s30, %s31
      %s80 = sadd.s32 %s44, %s40
      %s81 = ssub.s32 %s29, %s48
      %s82 = ssub.s32 %s79, %s80
      %s83 = sor.u32 %s81, %s82
      %p84 = scmp.eq.s32.totalorder %s83, 0
      %s86 = sadd.s32 %s85, 1
      %s87 = scalar_select %p84, %s85, %s86
      %p90 = pneg %p84
      %p91 = scmp.eq.s32.totalorder %s22, 1
      %p92 = por %p90, %p91
      %p93 = scmp.ne.s32.totalorder %s85, %s88
      %p94 = scmp.eq.s32.totalorder %s22, 0
      %p95 = por %p93, %p94
      %p96 = scmp.ne.s32.totalorder %s85, %s88
      %p97 = scmp.eq.s32.totalorder %s27, 1
      %p98 = por %p96, %p97
      %p99 = scmp.ne.s32.totalorder %s88, %s89
      %p100 = scmp.eq.s32.totalorder %s27, 0
      %p101 = por %p99, %p100
      %p102 = scmp.ne.s32.totalorder %s88, %s89
      %p103 = scmp.eq.s32.totalorder %s28, 1
      %p104 = por %p102, %p103
      %p106 = scmp.ne.s32.totalorder %s89, %s105
      %p107 = scmp.eq.s32.totalorder %s28, 0
      %p108 = por %p106, %p107
      %s109 = sadd.s32 %s30, %s31
      %s110 = sadd.s32 %s44, %s40
      %s111 = ssub.s32 %s29, %s48
      %s112 = ssub.s32 %s109, %s110
      %s113 = sor.u32 %s111, %s112
      %p114 = scmp.eq.s32.totalorder %s113, 0
      %s116 = sadd.s32 %s115, 1
      %s117 = scalar_select %p114, %s115, %s116
      %p120 = pneg %p114
      %p121 = scmp.eq.s32.totalorder %s22, 1
      %p122 = por %p120, %p121
      %p123 = scmp.ne.s32.totalorder %s115, %s118
      %p124 = scmp.eq.s32.totalorder %s22, 0
      %p125 = por %p123, %p124
      %p126 = scmp.ne.s32.totalorder %s115, %s118
      %p127 = scmp.eq.s32.totalorder %s27, 1
      %p128 = por %p126, %p127
      %p129 = scmp.ne.s32.totalorder %s118, %s119
      %p130 = scmp.eq.s32.totalorder %s27, 0
      %p131 = por %p129, %p130
      %p132 = scmp.ne.s32.totalorder %s118, %s119
      %p133 = scmp.eq.s32.totalorder %s28, 1
      %p134 = por %p132, %p133
      %p136 = scmp.ne.s32.totalorder %s119, %s135
      %p137 = scmp.eq.s32.totalorder %s28, 0
      %p138 = por %p136, %p137
      %s139 = sadd.s32 %s30, %s31
      %s140 = sadd.s32 %s44, %s40
      %s141 = ssub.s32 %s29, %s48
      %s142 = ssub.s32 %s139, %s140
      %s143 = sor.u32 %s141, %s142
      %p144 = scmp.eq.s32.totalorder %s143, 0
      %s146 = sadd.s32 %s145, 1
      %s147 = scalar_select %p144, %s145, %s146
      %p150 = pneg %p144
      %p151 = scmp.eq.s32.totalorder %s22, 1
      %p152 = por %p150, %p151
      %p153 = scmp.ne.s32.totalorder %s145, %s148
      %p154 = scmp.eq.s32.totalorder %s22, 0
      %p155 = por %p153, %p154
      %p156 = scmp.ne.s32.totalorder %s145, %s148
      %p157 = scmp.eq.s32.totalorder %s27, 1
      %p158 = por %p156, %p157
      %p159 = scmp.ne.s32.totalorder %s148, %s149
      %p160 = scmp.eq.s32.totalorder %s27, 0
      %p161 = por %p159, %p160
      %p162 = scmp.ne.s32.totalorder %s148, %s149
      %p163 = scmp.eq.s32.totalorder %s28, 1
      %p164 = por %p162, %p163
      %p166 = scmp.ne.s32.totalorder %s149, %s165
      %p167 = scmp.eq.s32.totalorder %s28, 0
      %p168 = por %p166, %p167
      %s169 = sadd.s32 %s29, %s30
      %s170 = sadd.s32 %s48, %s44
      %s171 = ssub.s32 %s169, %s170
      %p172 = scmp.eq.s32.totalorder %s171, 0
      %s174 = sadd.s32 %s173, 1
      %s175 = scalar_select %p172, %s173, %s174
      %p178 = pneg %p172
      %p179 = scmp.eq.s32.totalorder %s22, 1
      %p180 = por %p178, %p179
      %p181 = scmp.ne.s32.totalorder %s173, %s176
      %p182 = scmp.eq.s32.totalorder %s22, 0
      %p183 = por %p181, %p182
      %p184 = scmp.ne.s32.totalorder %s173, %s176
      %p185 = scmp.eq.s32.totalorder %s27, 1
      %p186 = por %p184, %p185
      %p187 = scmp.ne.s32.totalorder %s176, %s177
      %p188 = scmp.eq.s32.totalorder %s27, 0
      %p189 = por %p187, %p188
      %p190 = scmp.ne.s32.totalorder %s176, %s177
      %p191 = scmp.eq.s32.totalorder %s28, 1
      %p192 = por %p190, %p191
      %p194 = scmp.ne.s32.totalorder %s177, %s193
      %p195 = scmp.eq.s32.totalorder %s28, 0
      %p196 = por %p194, %p195
      %s197 = sadd.s32 %s29, %s30
      %s198 = sadd.s32 %s48, %s44
      %s199 = ssub.s32 %s197, %s198
      %p200 = scmp.eq.s32.totalorder %s199, 0
      %s202 = sadd.s32 %s201, 1
      %s203 = scalar_select %p200, %s201, %s202
      %p206 = pneg %p200
      %p207 = scmp.eq.s32.totalorder %s22, 1
      %p208 = por %p206, %p207
      %p209 = scmp.ne.s32.totalorder %s201, %s204
      %p210 = scmp.eq.s32.totalorder %s22, 0
      %p211 = por %p209, %p210
      %p212 = scmp.ne.s32.totalorder %s201, %s204
      %p213 = scmp.eq.s32.totalorder %s27, 1
      %p214 = por %p212, %p213
      %p215 = scmp.ne.s32.totalorder %s204, %s205
      %p216 = scmp.eq.s32.totalorder %s27, 0
      %p217 = por %p215, %p216
      %p218 = scmp.ne.s32.totalorder %s204, %s205
      %p219 = scmp.eq.s32.totalorder %s28, 1
      %p220 = por %p218, %p219
      %p222 = scmp.ne.s32.totalorder %s205, %s221
      %p223 = scmp.eq.s32.totalorder %s28, 0
      %p224 = por %p222, %p223
      %s225 = sadd.s32 %s29, %s30
      %s226 = sadd.s32 %s48, %s44
      %s227 = ssub.s32 %s225, %s226
      %p228 = scmp.eq.s32.totalorder %s227, 0
      %s230 = sadd.s32 %s229, 1
      %s231 = scalar_select %p228, %s229, %s230
      %p234 = pneg %p228
      %p235 = scmp.eq.s32.totalorder %s22, 1
      %p236 = por %p234, %p235
      %p237 = scmp.ne.s32.totalorder %s229, %s232
      %p238 = scmp.eq.s32.totalorder %s22, 0
      %p239 = por %p237, %p238
      %p240 = scmp.ne.s32.totalorder %s229, %s232
      %p241 = scmp.eq.s32.totalorder %s27, 1
      %p242 = por %p240, %p241
      %p243 = scmp.ne.s32.totalorder %s232, %s233
      %p244 = scmp.eq.s32.totalorder %s27, 0
      %p245 = por %p243, %p244
      %p246 = scmp.ne.s32.totalorder %s232, %s233
      %p247 = scmp.eq.s32.totalorder %s28, 1
      %p248 = por %p246, %p247
      %p250 = scmp.ne.s32.totalorder %s233, %s249
      %p251 = scmp.eq.s32.totalorder %s28, 0
      %p252 = por %p250, %p251
      %p253 = scmp.le.s32.totalorder 1, %s22
      %p254 = scmp.lt.s32.totalorder %s22, 3
      %p255 = pnand %p253, %p254
      %p256 = pneg %p255
      // Predicated region
      $region9: #{tpu_custom_call.1} parent=5 // pred_check
        _
      $region10: #{tpu_custom_call.1} parent=5 // pred_check_branch
        %258 = sbr.rel (%p255) target = $region12
      $region11: #{tpu_custom_call.1} parent=5 // pred_region
        %s259 = ssub.s32 %s22, 1
      $region12: #{tpu_custom_call.1} parent=5 // pred_fallthru
        _
      %p260 = scmp.lt.s32.totalorder %s22, 2
      // Predicated region
      $region13: #{tpu_custom_call.1} parent=5 // pred_check
        %p261 = pneg %p260
      $region14: #{tpu_custom_call.1} parent=5 // pred_check_branch
        %263 = sbr.rel (%p261) target = $region16
      $region15: #{tpu_custom_call.1} parent=5 // pred_region
        // Predicated region
        $region17: #{tpu_custom_call.1} parent=15 // pred_check
          %p264 = pneg %p65
        $region18: #{tpu_custom_call.1} parent=15 // pred_check_branch
          %266 = sbr.rel (%p264) target = $region20
        $region19: #{tpu_custom_call.1} parent=15 // pred_region
          %s267 = sand.u32 %s55, 1
          %s268 = scalar_lea.sflag [#allocation6], %s267
          %s269 = sand.u32 %s55, 1
          %s270 = smul.addr %s269, 8
          %s271 = scalar_lea.vmem [#allocation5], %s270
          %s272 = sadd.s32 %s30, %s31
          %s273 = smul.u32 2, %s272
          %s275 = ssub.s32 128, 128
          %276 = vsyncadd %s268, %s275
          %s277 = smul.addr %s29, 2
          %s278 = sadd.s32 %s273, %s277
          %s279 = smul.addr %s278, 64
          %s280 = scalar_lea.hbm %s0, %s279
          %s282 = sshll.u32 %s271, 4
          %s283 = int_to_ptr.vmem [resolvable:$true] %s282
          %285 = dma.hbm_to_vmem [thread:$0]  %s280, 128, %s283, %s268
        $region20: #{tpu_custom_call.1} parent=15 // pred_fallthru
          _
        // Predicated region
        $region21: #{tpu_custom_call.1} parent=15 // pred_check
          %p286 = pneg %p95
        $region22: #{tpu_custom_call.1} parent=15 // pred_check_branch
          %288 = sbr.rel (%p286) target = $region24
        $region23: #{tpu_custom_call.1} parent=15 // pred_region
          %s289 = sand.u32 %s22, 1
          %s290 = scalar_lea.sflag [#allocation8], %s289
          %s291 = sand.u32 %s85, 1
          %s292 = smul.addr %s291, 8
          %s293 = scalar_lea.vmem [#allocation7], %s292
          %s294 = sadd.s32 %s30, %s31
          %s295 = smul.u32 2, %s294
          %s297 = ssub.s32 128, 128
          %298 = vsyncadd %s290, %s297
          %s299 = smul.addr %s29, 2
          %s300 = sadd.s32 %s295, %s299
          %s301 = smul.addr %s300, 64
          %s302 = scalar_lea.hbm %s1, %s301
          %s304 = sshll.u32 %s293, 4
          %s305 = int_to_ptr.vmem [resolvable:$true] %s304
          %307 = dma.hbm_to_vmem [thread:$0]  %s302, 128, %s305, %s290
        $region24: #{tpu_custom_call.1} parent=15 // pred_fallthru
          _
        // Predicated region
        $region25: #{tpu_custom_call.1} parent=15 // pred_check
          %p308 = pneg %p125
        $region26: #{tpu_custom_call.1} parent=15 // pred_check_branch
          %310 = sbr.rel (%p308) target = $region28
        $region27: #{tpu_custom_call.1} parent=15 // pred_region
          %s311 = sand.u32 %s22, 1
          %s312 = scalar_lea.sflag [#allocation8], %s311
          %s313 = sand.u32 %s115, 1
          %s314 = smul.addr %s313, 8
          %s315 = scalar_lea.vmem [#allocation9], %s314
          %s316 = sadd.s32 %s30, %s31
          %s317 = smul.u32 2, %s316
          %s319 = ssub.s32 128, 128
          %320 = vsyncadd %s312, %s319
          %s321 = smul.addr %s29, 2
          %s322 = sadd.s32 %s317, %s321
          %s323 = smul.addr %s322, 64
          %s324 = scalar_lea.hbm %s2, %s323
          %s326 = sshll.u32 %s315, 4
          %s327 = int_to_ptr.vmem [resolvable:$true] %s326
          %329 = dma.hbm_to_vmem [thread:$0]  %s324, 128, %s327, %s312
        $region28: #{tpu_custom_call.1} parent=15 // pred_fallthru
          _
        // Predicated region
        $region29: #{tpu_custom_call.1} parent=15 // pred_check
          %p330 = pneg %p155
        $region30: #{tpu_custom_call.1} parent=15 // pred_check_branch
          %332 = sbr.rel (%p330) target = $region32
        $region31: #{tpu_custom_call.1} parent=15 // pred_region
          %s333 = sand.u32 %s145, 1
          %s334 = scalar_lea.sflag [#allocation11], %s333
          %s335 = sand.u32 %s145, 1
          %s336 = smul.addr %s335, 8
          %s337 = scalar_lea.vmem [#allocation10], %s336
          %s338 = sadd.s32 %s30, %s31
          %s339 = smul.u32 2, %s338
          %s341 = ssub.s32 128, 128
          %342 = vsyncadd %s334, %s341
          %s343 = smul.addr %s29, 2
          %s344 = sadd.s32 %s339, %s343
          %s345 = smul.addr %s344, 64
          %s346 = scalar_lea.hbm %s3, %s345
          %s348 = sshll.u32 %s337, 4
          %s349 = int_to_ptr.vmem [resolvable:$true] %s348
          %351 = dma.hbm_to_vmem [thread:$0]  %s346, 128, %s349, %s334
        $region32: #{tpu_custom_call.1} parent=15 // pred_fallthru
          _
      $region16: #{tpu_custom_call.1} parent=5 // pred_fallthru
        _
      %p352 = scmp.le.s32.totalorder 1, %s22
      %p353 = scmp.lt.s32.totalorder %s22, 3
      %p354 = pnand %p352, %p353
      %p355 = pneg %p354
      // Predicated region
      $region33: #{tpu_custom_call.1} parent=5 // pred_check
        _
      $region34: #{tpu_custom_call.1} parent=5 // pred_check_branch
        %357 = sbr.rel (%p354) target = $region36
      $region35: #{tpu_custom_call.1} parent=5 // pred_region
        %s358 = ssub.s32 %s22, 1
        %s359 = sand.u32 %s58, 1
        %s360 = scalar_lea.sflag [#allocation6], %s359
        %s361 = sand.u32 %s58, 1
        %s362 = smul.addr %s361, 8
        %s363 = scalar_lea.vmem [#allocation5], %s362
        // Predicated region
        $region37: #{tpu_custom_call.1} parent=35 // pred_check
          %p364 = pneg %p71
        $region38: #{tpu_custom_call.1} parent=35 // pred_check_branch
          %366 = sbr.rel (%p364) target = $region40
        $region39: #{tpu_custom_call.1} parent=35 // pred_region
          %367 = dma.done %s360, 128
        $region40: #{tpu_custom_call.1} parent=35 // pred_fallthru
          _
        %s368 = sand.u32 %s27, 1
        %s369 = scalar_lea.sflag [#allocation8], %s368
        %s370 = sand.u32 %s88, 1
        %s371 = smul.addr %s370, 8
        %s372 = scalar_lea.vmem [#allocation7], %s371
        // Predicated region
        $region41: #{tpu_custom_call.1} parent=35 // pred_check
          %p373 = pneg %p101
        $region42: #{tpu_custom_call.1} parent=35 // pred_check_branch
          %375 = sbr.rel (%p373) target = $region44
        $region43: #{tpu_custom_call.1} parent=35 // pred_region
          %376 = dma.done %s369, 128
        $region44: #{tpu_custom_call.1} parent=35 // pred_fallthru
          _
        %s377 = sand.u32 %s27, 1
        %s378 = scalar_lea.sflag [#allocation8], %s377
        %s379 = sand.u32 %s118, 1
        %s380 = smul.addr %s379, 8
        %s381 = scalar_lea.vmem [#allocation9], %s380
        // Predicated region
        $region45: #{tpu_custom_call.1} parent=35 // pred_check
          %p382 = pneg %p131
        $region46: #{tpu_custom_call.1} parent=35 // pred_check_branch
          %384 = sbr.rel (%p382) target = $region48
        $region47: #{tpu_custom_call.1} parent=35 // pred_region
          %385 = dma.done %s378, 128
        $region48: #{tpu_custom_call.1} parent=35 // pred_fallthru
          _
        %s386 = sand.u32 %s148, 1
        %s387 = scalar_lea.sflag [#allocation11], %s386
        %s388 = sand.u32 %s148, 1
        %s389 = smul.addr %s388, 8
        %s390 = scalar_lea.vmem [#allocation10], %s389
        // Predicated region
        $region49: #{tpu_custom_call.1} parent=35 // pred_check
          %p391 = pneg %p161
        $region50: #{tpu_custom_call.1} parent=35 // pred_check_branch
          %393 = sbr.rel (%p391) target = $region52
        $region51: #{tpu_custom_call.1} parent=35 // pred_region
          %394 = dma.done %s387, 128
        $region52: #{tpu_custom_call.1} parent=35 // pred_fallthru
          _
        %s395 = sand.u32 %s58, 1
        %s396 = scalar_lea.sflag [#allocation6], %s395
        %s397 = sand.u32 %s58, 1
        %s398 = smul.addr %s397, 8
        %s399 = scalar_lea.vmem [#allocation5], %s398
        %p400 = pneg %p71
        %p401 = pneg %p68
        %s402 = sand.u32 %s27, 1
        %s403 = scalar_lea.sflag [#allocation8], %s402
        %s404 = sand.u32 %s88, 1
        %s405 = smul.addr %s404, 8
        %s406 = scalar_lea.vmem [#allocation7], %s405
        %p407 = pneg %p101
        %p408 = pneg %p98
        %s409 = sand.u32 %s27, 1
        %s410 = scalar_lea.sflag [#allocation8], %s409
        %s411 = sand.u32 %s118, 1
        %s412 = smul.addr %s411, 8
        %s413 = scalar_lea.vmem [#allocation9], %s412
        %p414 = pneg %p131
        %p415 = pneg %p128
        %s416 = sand.u32 %s148, 1
        %s417 = scalar_lea.sflag [#allocation11], %s416
        %s418 = sand.u32 %s148, 1
        %s419 = smul.addr %s418, 8
        %s420 = scalar_lea.vmem [#allocation10], %s419
        %p421 = pneg %p161
        %p422 = pneg %p158
        %p423 = pneg %p189
        %p424 = pneg %p186
        %s425 = sadd.s32 %s32, %s33
        %p426 = scmp.lt.s32.totalorder %s425, 1
        %s427 = scalar_select %p426, %s425, 1
        %s428 = scalar_lea.vmem %s4, %s427
        %p429 = pneg %p217
        %p430 = pneg %p214
        %s431 = sadd.s32 %s32, %s33
        %p432 = scmp.lt.s32.totalorder %s431, 1
        %s433 = scalar_select %p432, %s431, 1
        %s434 = scalar_lea.vmem %s5, %s433
        %p435 = pneg %p245
        %p436 = pneg %p242
        %s437 = sadd.s32 %s32, %s33
        %p438 = scmp.lt.s32.totalorder %s437, 1
        %s439 = scalar_select %p438, %s437, 1
        %s440 = scalar_lea.vmem %s6, %s439
        %s441 = sadd.s32 %s33, %s34
        %s442 = smul.u32 2, %s441
        %s443 = sadd.s32 %s33, %s34
        %s444 = smul.u32 2, %s443
        %s445 = sadd.s32 %s33, %s34
        %s446 = smul.u32 2, %s445
        %s447 = sadd.s32 %s33, %s34
        %s448 = smul.u32 2, %s447
        %s449 = sadd.s32 %s32, %s33
        %p450 = scmp.lt.s32.totalorder %s449, 1
        %s451 = scalar_select %p450, %s449, 1
        %s452 = scalar_lea.vmem %s4, %s451
        %s453 = sadd.s32 %s32, %s33
        %s454 = sadd.s32 %s32, %s33
        %p455 = scmp.lt.s32.totalorder %s454, 1
        %s456 = scalar_select %p455, %s454, 1
        %s457 = scalar_lea.vmem %s5, %s456
        %s458 = sadd.s32 %s32, %s33
        %s459 = sadd.s32 %s32, %s33
        %p460 = scmp.lt.s32.totalorder %s459, 1
        %s461 = scalar_select %p460, %s459, 1
        %s462 = scalar_lea.vmem %s6, %s461
        %s463 = sadd.s32 %s32, %s33
        %p464 = scmp.eq.s32.totalorder %s34, 0
        // Predicated region
        $region53: #{tpu_custom_call.1} parent=35 // pred_check
          %p465 = pneg %p464
        $region54: #{tpu_custom_call.1} parent=35 // pred_check_branch
          %467 = sbr.rel (%p465) target = $region56
        $region55: #{tpu_custom_call.1} parent=35 // pred_region
          %v468 = vlaneseq
          %vm469 = vcmp.ge.s32.totalorder %v468, 0
          %vm470 = vcmp.lt.s32.totalorder %v468, 256
          %vm471 = vmand %vm469, %vm470
          %472 = vst.msk [vmem:[#allocation2] sm:$0x3] %vm471, 0.0
          %473 = vst [vmem:[#allocation3] sm:$0xff] 0.0
          %474 = vst [vmem:[#allocation4] sm:$0xff] 0.0
        $region56: #{tpu_custom_call.1} parent=35 // pred_fallthru
          _
        %v475 = vld [vmem:[%s363] sm:$0xff]
        %v476 = vld [vmem:[%s372] sm:$0xff]
        %v477 = vld [vmem:[%s381] sm:$0xff]
        %v478 = vld [vmem:[%s390] sm:$0xff]
        %v479 = vsub.f32 %v475, %v476
        %v480 = vld [vmem:[#allocation3] sm:$0xff]
        %v481 = vmul.f32 %v479, %v479
        %v482 = vadd.f32 %v480, %v481
        %483 = vst [vmem:[#allocation3] sm:$0xff] %v482
        %v484 = vadd.f32 %v477, %v476
        %v485 = vsub.f32 %v484, %v478
        %v486 = vld [vmem:[#allocation4] sm:$0xff]
        %v487 = vmul.f32 %v485, %v485
        %v488 = vadd.f32 %v486, %v487
        %489 = vst [vmem:[#allocation4] sm:$0xff] %v488
        %v490 = vmul.f32 %v475, %v476
        %v492 = vcombine.high %v490, %v490
        %vm494 = vcmask 1043456
        %v495 = vsel %vm494, %v490, 0.0
        %v496 = vrot.slane %v495, 4
        %v497 = vadd.f32 %v495, %v496
        %v498 = vrot.slane %v497, 2
        %v499 = vadd.f32 %v497, %v498
        %v500 = vrot.slane %v499, 1
        %v501 = vadd.f32 %v499, %v500
        %v502 = vsel %vm494, %v492, 0.0
        %v503 = vrot.slane %v502, 4
        %v504 = vadd.f32 %v502, %v503
        %v505 = vrot.slane %v504, 2
        %v506 = vadd.f32 %v504, %v505
        %v507 = vrot.slane %v506, 1
        %v508 = vadd.f32 %v506, %v507
        %v509 = vmul.f32 %v475, %v475
        %v511 = vcombine.high %v509, %v509
        %v513 = vsel %vm494, %v509, 0.0
        %v514 = vrot.slane %v513, 4
        %v515 = vadd.f32 %v513, %v514
        %v516 = vrot.slane %v515, 2
        %v517 = vadd.f32 %v515, %v516
        %v518 = vrot.slane %v517, 1
        %v519 = vadd.f32 %v517, %v518
        %v520 = vsel %vm494, %v511, 0.0
        %v521 = vrot.slane %v520, 4
        %v522 = vadd.f32 %v520, %v521
        %v523 = vrot.slane %v522, 2
        %v524 = vadd.f32 %v522, %v523
        %v525 = vrot.slane %v524, 1
        %v526 = vadd.f32 %v524, %v525
        %v527 = vmul.f32 %v476, %v476
        %v529 = vcombine.high %v527, %v527
        %v531 = vsel %vm494, %v527, 0.0
        %v532 = vrot.slane %v531, 4
        %v533 = vadd.f32 %v531, %v532
        %v534 = vrot.slane %v533, 2
        %v535 = vadd.f32 %v533, %v534
        %v536 = vrot.slane %v535, 1
        %v537 = vadd.f32 %v535, %v536
        %v538 = vsel %vm494, %v529, 0.0
        %v539 = vrot.slane %v538, 4
        %v540 = vadd.f32 %v538, %v539
        %v541 = vrot.slane %v540, 2
        %v542 = vadd.f32 %v540, %v541
        %v543 = vrot.slane %v542, 1
        %v544 = vadd.f32 %v542, %v543
        %v545 = vmax.f32 %v519, 1e-24
        %v546 = vmax.f32 %v526, 1e-24
        %v547 = vrsqrt.pop %v545
        %v548 = vrsqrt.pop %v546
        %v549 = vmul.f32 %v501, %v547
        %v550 = vmul.f32 %v508, %v548
        %v551 = vmax.f32 %v537, 1e-24
        %v552 = vmax.f32 %v544, 1e-24
        %v553 = vrsqrt.pop %v551
        %v554 = vrsqrt.pop %v552
        %v555 = vmul.f32 %v549, %v553
        %v556 = vmul.f32 %v550, %v554
        %v557 = vand.u32 2147483647, %v555
        %v558 = vand.u32 2147483647, %v556
        %v559 = vmin.f32 %v557, 1.0
        %v560 = vmin.f32 %v558, 1.0
        %v561 = vmul.f32 %v559, -0.0187293
        %v562 = vmul.f32 %v560, -0.0187293
        %v563 = vadd.f32 %v561, 0.074261
        %v564 = vadd.f32 %v562, 0.074261
        %v565 = vmul.f32 %v563, %v559
        %v566 = vmul.f32 %v564, %v560
        %v567 = vadd.f32 %v565, -0.2121144
        %v568 = vadd.f32 %v566, -0.2121144
        %v569 = vmul.f32 %v567, %v559
        %v570 = vmul.f32 %v568, %v560
        %v571 = vadd.f32 %v569, 1.5707288
        %v572 = vadd.f32 %v570, 1.5707288
        %v573 = vsub.f32 1.0, %v559
        %v574 = vsub.f32 1.0, %v560
        %v575 = vrsqrt.pop %v573
        %v576 = vmul.f32 %v573, %v575
        %vm577 = vcmp.eq.f32.partialorder %v573, inf
        %v578 = vsel %vm577, %v573, %v576
        %vm579 = vcmp.eq.f32.partialorder %v573, 0.0
        %v580 = vand.u32 %v573, 2147483648
        %v581 = vsel %vm579, %v580, %v578
        %v582 = vrsqrt.pop %v574
        %v583 = vmul.f32 %v574, %v582
        %vm584 = vcmp.eq.f32.partialorder %v574, inf
        %v585 = vsel %vm584, %v574, %v583
        %vm586 = vcmp.eq.f32.partialorder %v574, 0.0
        %v587 = vand.u32 %v574, 2147483648
        %v588 = vsel %vm586, %v587, %v585
        %v589 = vmul.f32 %v581, %v571
        %v590 = vmul.f32 %v588, %v572
        %vm591 = vcmp.ge.f32.partialorder %v555, 0.0
        %vm592 = vcmp.ge.f32.partialorder %v556, 0.0
        %v593 = vsub.f32 3.1415927, %v589
        %v594 = vsub.f32 3.1415927, %v590
        %v595 = vsel %vm591, %v589, %v593
        %v596 = vsel %vm592, %v590, %v594
        %vm597 = vcmp.le.f32.partialorder %v557, 1.0
        %vm598 = vcmp.le.f32.partialorder %v558, 1.0
        %v599 = vld [vmem:[#allocation2] sm:$0x3]
        %v600 = vsel %vm597, %v595, 0.0
        %v601 = vsel %vm598, %v596, 0.0
        %v604 = vcombine.low %v600, %v601
        %v606 = vunpack.c.l.s4 1966171168
        %v607 = vunpack.c.0.s8 %v606
        %v608 = vlaneseq
        %v609 = vshrl.u32 %v608, 7
        %v610 = vsub.s32 %v607, %v609
        %v611 = vrot.slane %v604, %v610
        %v613 = vunpack.c.l.s4 1966171168
        %v614 = vunpack.c.0.s8 %v613
        %v615 = vlaneseq
        %v616 = vshrl.u32 %v615, 7
        %v617 = vsub.s32 %v614, %v616
        %v618 = vrot.slane %v611, %v617
        %v620 = vadd.f32 %v599, %v618
        %v621 = vlaneseq
        %vm622 = vcmp.ge.s32.totalorder %v621, 0
        %vm623 = vcmp.lt.s32.totalorder %v621, 256
        %vm624 = vmand %vm622, %vm623
        %625 = vst.msk [vmem:[#allocation2] sm:$0x3] %vm624, %v620
        // Predicated region
        $region57: #{tpu_custom_call.1} parent=35 // pred_check
          %p626 = pneg %p464
        $region58: #{tpu_custom_call.1} parent=35 // pred_check_branch
          %628 = sbr.rel (%p626) target = $region60
        $region59: #{tpu_custom_call.1} parent=35 // pred_region
          %v629 = vld [vmem:[#allocation2] sm:$0x3]
          %v631 = vlaneseq
          %v632 = vshrl.u32 %v631, 7
          %v633 = vsub.s32 0, %v632
          %v634 = vrot.slane %v629, %v633
          %v635 = vlaneseq
          %v636 = vshrl.u32 %v635, 7
          %v637 = vsub.s32 1, %v636
          %v638 = vrot.slane %v629, %v637
          %vm641 = vcmask 1040384
          %v642 = vsel %vm641, %v634, 0.0
          %v643 = vsel %vm641, %v638, 0.0
          %v644 = vadd.f32 %v642, %v643
          %645 = vadd.xlane.f32.xlu0 %v644
          %v646 = vpop.xlane.xlu0 %645
          %v647 = vrot.slane %v646, 4
          %v648 = vadd.f32 %v646, %v647
          %v649 = vrot.slane %v648, 2
          %v650 = vadd.f32 %v648, %v649
          %v651 = vrot.slane %v650, 1
          %v652 = vadd.f32 %v650, %v651
          %s653 = vtos %v652
          %v654 = vstv %s653
          %vm655 = vcmask 0
          %656 = vst.msk [vmem:[%s452] sm:$0x1] %vm655, %v654
          %v657 = vld [vmem:[#allocation3] sm:$0xff]
          %v659 = vcombine.high %v657, %v657
          %v661 = vsel %vm494, %v657, 0.0
          %v662 = vsel %vm494, %v659, 0.0
          %v663 = vadd.f32 %v661, %v662
          %664 = vadd.xlane.f32.xlu0 %v663
          %v665 = vpop.xlane.xlu0 %664
          %v666 = vrot.slane %v665, 4
          %v667 = vadd.f32 %v665, %v666
          %v668 = vrot.slane %v667, 2
          %v669 = vadd.f32 %v667, %v668
          %v670 = vrot.slane %v669, 1
          %v671 = vadd.f32 %v669, %v670
          %s672 = vtos %v671
          %v673 = vstv %s672
          %674 = vst.msk [vmem:[%s457] sm:$0x1] %vm655, %v673
          %v675 = vld [vmem:[#allocation4] sm:$0xff]
          %v677 = vcombine.high %v675, %v675
          %v679 = vsel %vm494, %v675, 0.0
          %v680 = vsel %vm494, %v677, 0.0
          %v681 = vadd.f32 %v679, %v680
          %682 = vadd.xlane.f32.xlu0 %v681
          %v683 = vpop.xlane.xlu0 %682
          %v684 = vrot.slane %v683, 4
          %v685 = vadd.f32 %v683, %v684
          %v686 = vrot.slane %v685, 2
          %v687 = vadd.f32 %v685, %v686
          %v688 = vrot.slane %v687, 1
          %v689 = vadd.f32 %v687, %v688
          %s690 = vtos %v689
          %v691 = vstv %s690
          %692 = vst.msk [vmem:[%s462] sm:$0x1] %vm655, %v691
        $region60: #{tpu_custom_call.1} parent=35 // pred_fallthru
          _
        %s693 = sadd.s32 %s32, %s33
        %p694 = scmp.lt.s32.totalorder %s693, 1
        %s695 = scalar_select %p694, %s693, 1
        %s696 = scalar_lea.vmem %s4, %s695
        %s697 = sadd.s32 %s32, %s33
        %p698 = scmp.lt.s32.totalorder %s697, 1
        %s699 = scalar_select %p698, %s697, 1
        %s700 = scalar_lea.vmem %s5, %s699
        %s701 = sadd.s32 %s32, %s33
        %p702 = scmp.lt.s32.totalorder %s701, 1
        %s703 = scalar_select %p702, %s701, 1
        %s704 = scalar_lea.vmem %s6, %s703
        // Predicated region
        $region61: #{tpu_custom_call.1} parent=35 // pred_check
          %p705 = pneg %p186
        $region62: #{tpu_custom_call.1} parent=35 // pred_check_branch
          %707 = sbr.rel (%p705) target = $region64
        $region63: #{tpu_custom_call.1} parent=35 // pred_region
          %s708 = sadd.s32 %s32, %s33
        $region64: #{tpu_custom_call.1} parent=35 // pred_fallthru
          _
        // Predicated region
        $region65: #{tpu_custom_call.1} parent=35 // pred_check
          %p709 = pneg %p214
        $region66: #{tpu_custom_call.1} parent=35 // pred_check_branch
          %711 = sbr.rel (%p709) target = $region68
        $region67: #{tpu_custom_call.1} parent=35 // pred_region
          %s712 = sadd.s32 %s32, %s33
        $region68: #{tpu_custom_call.1} parent=35 // pred_fallthru
          _
        // Predicated region
        $region69: #{tpu_custom_call.1} parent=35 // pred_check
          %p713 = pneg %p242
        $region70: #{tpu_custom_call.1} parent=35 // pred_check_branch
          %715 = sbr.rel (%p713) target = $region72
        $region71: #{tpu_custom_call.1} parent=35 // pred_region
          %s716 = sadd.s32 %s32, %s33
        $region72: #{tpu_custom_call.1} parent=35 // pred_fallthru
          _
      $region36: #{tpu_custom_call.1} parent=5 // pred_fallthru
        _
      %p717 = scmp.le.s32.totalorder 2, %s22
      // Predicated region
      $region73: #{tpu_custom_call.1} parent=5 // pred_check
        %p718 = pneg %p717
      $region74: #{tpu_custom_call.1} parent=5 // pred_check_branch
        %720 = sbr.rel (%p718) target = $region76
      $region75: #{tpu_custom_call.1} parent=5 // pred_region
        %s721 = ssub.s32 %s22, 2
        // Predicated region
        $region77: #{tpu_custom_call.1} parent=75 // pred_check
          %p722 = pneg %p192
        $region78: #{tpu_custom_call.1} parent=75 // pred_check_branch
          %724 = sbr.rel (%p722) target = $region80
        $region79: #{tpu_custom_call.1} parent=75 // pred_region
          %s725 = sadd.s32 %s35, %s36
          %p726 = scmp.lt.s32.totalorder %s725, 1
          %s727 = scalar_select %p726, %s725, 1
          %s728 = scalar_lea.vmem %s4, %s727
        $region80: #{tpu_custom_call.1} parent=75 // pred_fallthru
          _
        // Predicated region
        $region81: #{tpu_custom_call.1} parent=75 // pred_check
          %p729 = pneg %p220
        $region82: #{tpu_custom_call.1} parent=75 // pred_check_branch
          %731 = sbr.rel (%p729) target = $region84
        $region83: #{tpu_custom_call.1} parent=75 // pred_region
          %s732 = sadd.s32 %s35, %s36
          %p733 = scmp.lt.s32.totalorder %s732, 1
          %s734 = scalar_select %p733, %s732, 1
          %s735 = scalar_lea.vmem %s5, %s734
        $region84: #{tpu_custom_call.1} parent=75 // pred_fallthru
          _
        // Predicated region
        $region85: #{tpu_custom_call.1} parent=75 // pred_check
          %p736 = pneg %p248
        $region86: #{tpu_custom_call.1} parent=75 // pred_check_branch
          %738 = sbr.rel (%p736) target = $region88
        $region87: #{tpu_custom_call.1} parent=75 // pred_region
          %s739 = sadd.s32 %s35, %s36
          %p740 = scmp.lt.s32.totalorder %s739, 1
          %s741 = scalar_select %p740, %s739, 1
          %s742 = scalar_lea.vmem %s6, %s741
        $region88: #{tpu_custom_call.1} parent=75 // pred_fallthru
          _
      $region76: #{tpu_custom_call.1} parent=5 // pred_fallthru
        _
    $region6: #{tpu_custom_call.1} parent=1 // loop_footer
      %s26 = sadd.s32 1, %s22
    $region7: #{tpu_custom_call.1} parent=1 // loop_footer_branch
      %21 = sbr.rel target = $region3
    $region8: #{tpu_custom_call.1} parent=1 // loop_exit
      _
    %743 = vsyncpa [#allocation6], 1
    %s744 = scalar_lea.sflag [#allocation6], 1
    %745 = vsyncpa %s744, 1
    %746 = vsyncpa [#allocation8], 1
    %s747 = scalar_lea.sflag [#allocation8], 1
    %748 = vsyncpa %s747, 1
    %749 = vsyncpa [#allocation11], 1
    %s750 = scalar_lea.sflag [#allocation11], 1
    %751 = vsyncpa %s750, 1

</llo_original>
